<compile_context>
chip_gen: v6e
topology: v6e:2x2x1
jax: 0.10.0
libtpu: 0.0.40
codegen_flags: <defaults>
</compile_context>

<pallas_src>
import numpy as np
import jax
import jax.numpy as jnp
from jax.experimental import pallas as pl
from jax.experimental.pallas import tpu as pltpu

# Scaled-down, deterministic stand-ins for the VGG-16 classifier shapes.
B = 2                 # batch
C = 8                 # channels from previous_model (VGG features would be 512)
H = W = 14            # feature-map spatial size (14 -> 7 == exact 2x2 avg pool)
POOL = 7
S = H * W             # 196
SP = POOL * POOL      # 49
D1 = C * SP           # flattened pooled size (stand-in for 25088)
D1_PAD = 512          # D1 zero-padded to a multiple of 128 (real 25088 is already aligned)
H1 = 256              # vgg.classifier[layer] out features (stand-in for 4096)
K = 10                # class_num
K_PAD = 128           # lane-padded class dim for a lane-dense output store

# Streamed-GEMM tile sizes.  At real VGG size these would be sized for the
# generation's VMEM budget (e.g. bf16 (2048, 2048) tiles on v7x, larger on v6e).
TK = 128              # tile along D1 (reduction)
TN = 128              # tile along H1 (output, megacore-parallel)


def _pool_matrix():
    # AdaptiveAvgPool2d((7,7)) on a 14x14 map is an exact 2x2 average pool,
    # written as a (H*W, 7*7) matrix so the reduction runs on the MXU.
    A = np.zeros((H, POOL), np.float32)
    for p in range(POOL):
        A[2 * p, p] = 0.5
        A[2 * p + 1, p] = 0.5
    return np.kron(A, A)        # (196, 49), non-zero entries are 0.25


# ---------------------------------------------------------------------------
# Stage 1: batched adaptive avg-pool (all channels in one MXU matmul).
# ---------------------------------------------------------------------------
def pool_kernel(x_ref, p_ref, out_ref):
    out_ref[...] = jnp.dot(x_ref[...], p_ref[...],
                           preferred_element_type=jnp.float32).astype(out_ref.dtype)


# ---------------------------------------------------------------------------
# Stage 2: streamed Linear(D1 -> H1) + bias + ReLU (Dropout eval == identity).
# Grid = (H1 // TN "parallel", D1_PAD // TK "arbitrary"); w1 tiles stream
# through VMEM with automatic double-buffering; f32 accumulator in VMEM scratch.
# ---------------------------------------------------------------------------
def fc1_kernel(x_ref, w1_ref, b1_ref, xint_ref, acc_ref):
    k = pl.program_id(1)

    @pl.when(k == 0)
    def _():
        acc_ref[...] = jnp.zeros_like(acc_ref)

    acc_ref[...] += jnp.dot(x_ref[...], w1_ref[...],
                            preferred_element_type=jnp.float32)

    @pl.when(k == pl.num_programs(1) - 1)
    def _():
        h = jnp.maximum(acc_ref[...] + b1_ref[...], 0.0)   # bias + ReLU epilogue
        xint_ref[...] = h.astype(xint_ref.dtype)


# ---------------------------------------------------------------------------
# Stage 3: lastfc (H1 -> class_num).  Small; fully VMEM-resident, lane-padded.
# ---------------------------------------------------------------------------
def fc2_kernel(h_ref, w2_ref, b2_ref, out_ref):
    out_ref[...] = (jnp.dot(h_ref[...], w2_ref[...],
                            preferred_element_type=jnp.float32) + b2_ref[...])


def classifier_forward(x_nchw, w1, b1, w2, b2):
    # ----- Stage 1: pool all B*C channel maps at once, emit bf16 activations.
    xs = x_nchw.reshape(B * C, S)
    pool = jnp.asarray(_pool_matrix())
    pooled = pl.pallas_call(
        pool_kernel,
        out_shape=jax.ShapeDtypeStruct((B * C, SP), jnp.bfloat16),
        in_specs=[pl.BlockSpec(memory_space=pltpu.MemorySpace.VMEM)] * 2,
        out_specs=pl.BlockSpec(memory_space=pltpu.MemorySpace.VMEM),
    )(xs, pool)
    # torch Flatten order is channel-major: (B, C, 7, 7) -> (B, C*49).
    xflat = pooled.reshape(B, D1)
    xflat = jnp.pad(xflat, ((0, 0), (0, D1_PAD - D1)))          # zero-pad reduction dim

    # Weights stored (in_features, out_features); the big streamed weight is bf16.
    # (In a real deployment w1 would be stored pre-cast / pre-padded once.)
    w1b = jnp.pad(w1.astype(jnp.bfloat16), ((0, D1_PAD - D1), (0, 0)))

    # ----- Stage 2: streamed GEMM + bias + ReLU.
    x_internal = pl.pallas_call(
        fc1_kernel,
        out_shape=jax.ShapeDtypeStruct((B, H1), jnp.float32),
        grid_spec=pltpu.PrefetchScalarGridSpec(
            num_scalar_prefetch=0,
            grid=(H1 // TN, D1_PAD // TK),
            in_specs=[pl.BlockSpec((B, TK), lambda j, k: (0, k)),    # activations
                      pl.BlockSpec((TK, TN), lambda j, k: (k, j)),   # w1 stream
                      pl.BlockSpec((1, TN), lambda j, k: (0, j))],   # b1
            out_specs=pl.BlockSpec((B, TN), lambda j, k: (0, j)),
            scratch_shapes=[pltpu.VMEM((B, TN), jnp.float32)]),
        compiler_params=pltpu.CompilerParams(
            dimension_semantics=("parallel", "arbitrary"),
            vmem_limit_bytes=32 * 1024 * 1024),
    )(xflat, w1b, b1.reshape(1, H1))

    # ----- Stage 3: lastfc with lane-padded class dim; Dropout(eval) is identity.
    w2p = jnp.pad(w2, ((0, 0), (0, K_PAD - K)))
    b2p = jnp.pad(b2.reshape(1, K), ((0, 0), (0, K_PAD - K)))
    out_pad = pl.pallas_call(
        fc2_kernel,
        out_shape=jax.ShapeDtypeStruct((B, K_PAD), jnp.float32),
        in_specs=[pl.BlockSpec(memory_space=pltpu.MemorySpace.VMEM)] * 3,
        out_specs=pl.BlockSpec(memory_space=pltpu.MemorySpace.VMEM),
    )(x_internal, w2p, b2p)

    return out_pad[:, :K], x_internal


def reference(x_nchw, w1, b1, w2, b2):
    xp = x_nchw.reshape(B, C, POOL, 2, POOL, 2).mean(axis=(3, 5))   # avgpool 14->7
    flat = xp.reshape(B, D1)
    # Match the kernel's bf16 activation/weight quantization (f32 accumulation).
    flat_b = flat.astype(jnp.bfloat16).astype(jnp.float32)
    w1_b = w1.astype(jnp.bfloat16).astype(jnp.float32)
    h = jnp.maximum(flat_b @ w1_b + b1, 0.0)
    return h @ w2 + b2, h


if __name__ == "__main__":
    key = jax.random.PRNGKey(0)
    kx, k1, kb1, k2, kb2 = jax.random.split(key, 5)
    x = jax.random.normal(kx, (B, C, H, W), jnp.float32)

    # Deterministic parameter init (torch Linear default: U(-1/sqrt(fan_in), ...)).
    lim1 = 1.0 / float(np.sqrt(D1))
    w1 = jax.random.uniform(k1, (D1, H1), jnp.float32, -lim1, lim1)
    b1 = jax.random.uniform(kb1, (H1,), jnp.float32, -lim1, lim1)
    lim2 = 1.0 / float(np.sqrt(H1))
    w2 = jax.random.uniform(k2, (H1, K), jnp.float32, -lim2, lim2)
    b2 = jax.random.uniform(kb2, (K,), jnp.float32, -lim2, lim2)

    out, x_internal = classifier_forward(x, w1, b1, w2, b2)
    jax.block_until_ready((out, x_internal))

    ref_out, ref_h = reference(x, w1, b1, w2, b2)
    assert np.allclose(np.asarray(x_internal), np.asarray(ref_h),
                       rtol=1e-2, atol=1e-2)
    assert np.allclose(np.asarray(out), np.asarray(ref_out),
                       rtol=1e-2, atol=1e-2)
    print("KERNEL_OK")
</pallas_src>

<mosaic_0001>
module attributes {stable_mosaic.version = 11 : i64} {
  func.func @pool_kernel(%arg0: memref<16x196xf32, #tpu.memory_space<vmem>>, %arg1: memref<196x49xf32, #tpu.memory_space<vmem>>, %arg2: memref<16x49xbf16, #tpu.memory_space<vmem>>) attributes {dimension_semantics = [], scalar_prefetch = 0 : i64, scratch_operands = 0 : i64, tpu.core_type = #tpu.core_type<tc>} {
    %c0 = arith.constant 0 : index
    %c0_0 = arith.constant 0 : index
    %0 = vector.load %arg0[%c0, %c0_0] : memref<16x196xf32, #tpu.memory_space<vmem>>, vector<16x196xf32>
    %c0_1 = arith.constant 0 : index
    %c0_2 = arith.constant 0 : index
    %1 = vector.load %arg1[%c0_1, %c0_2] : memref<196x49xf32, #tpu.memory_space<vmem>>, vector<196x49xf32>
    %cst = arith.constant dense<0.000000e+00> : vector<16x49xf32>
    %2 = tpu.matmul %0, %1, %cst {dimension_numbers = #tpu.dot_dimension_numbers<[1], [0], [0], [1], [0, 0, 1, 1], [], []>} : vector<16x196xf32>, vector<196x49xf32>, vector<16x49xf32> -> vector<16x49xf32>
    %3 = arith.truncf %2 : vector<16x49xf32> to vector<16x49xbf16>
    %c0_3 = arith.constant 0 : index
    %c0_4 = arith.constant 0 : index
    %4 = vector.load %arg2[%c0_3, %c0_4] : memref<16x49xbf16, #tpu.memory_space<vmem>>, vector<16x49xbf16>
    tpu.vector_store %arg2[%c0_3, %c0_4], %3 {strides = array<i32>} : memref<16x49xbf16, #tpu.memory_space<vmem>>, vector<16x49xbf16>,
    return
  }
}

</mosaic_0001>

<llo_original>
// kernel: tpu_custom_call.1
$region0: #{tpu_custom_call.1}
  #allocation0 [shape = 'u32[]', space=smem, size = 0x4, offset = 0x4, fixed_abs, tag = 'smem constant byte address 0x4 - core index']
  #allocation1 [shape = 'u32[144,128]{1,0:T(1,128)}', space=vmem, size = 0x12000, scoped, tag = 'internal scratch']
  %s0 = inlined_call_operand.vmem [shape: f32[16,196], index: 0, kind: input, shape index: {}]
  %s1 = inlined_call_operand.vmem [shape: f32[196,49], index: 1, kind: input, shape index: {}]
  %s2 = inlined_call_operand.hbm [shape: bf16[16,49], index: 2, kind: output, shape index: {}]
  %s3 = sld [smem:[#allocation0]]
  $region18: #{tpu_custom_call.1} parent=0
    _
  %s5 = ssub.s32 1, %s3
  %s6 = scalar_select 0, %s5, %s3
  $region1: #{tpu_custom_call.1} parent=0
    #allocation2 [shape = 'u8[4096]{0}', space=vmem, size = 0x1000, scoped, tag = 'output window, operand 0, single buffered']
    #allocation3 [shape = 's32[1]{0}', space=sflag, size = 0x4, scoped, tag = 'scoped memory for tpu_custom_call.1']
    %7 = vsyncpa [#allocation3], 0
    // Predicated region
    $region2: #{tpu_custom_call.1} parent=1 // pred_check
      _
    $region3: #{tpu_custom_call.1} parent=1 // pred_check_branch
      %9 = sbr.rel (0) target = $region5
    $region4: #{tpu_custom_call.1} parent=1 // pred_region
      _
    $region5: #{tpu_custom_call.1} parent=1 // pred_fallthru
      _
    // Predicated region
    $region6: #{tpu_custom_call.1} parent=1 // pred_check
      _
    $region7: #{tpu_custom_call.1} parent=1 // pred_check_branch
      %11 = sbr.rel (0) target = $region9
    $region8: #{tpu_custom_call.1} parent=1 // pred_region
      _
    $region9: #{tpu_custom_call.1} parent=1 // pred_fallthru
      _
    %v12 = vld [vmem:[%s0] sm:$0xff]
    %v13 = vld [vmem:[%s0 + $0x8] sm:$0xff]
    %v14 = vld [vmem:[%s0 + $0x10] sm:$0xff]
    %v15 = vld [vmem:[%s0 + $0x18] sm:$0xff]
    %v16 = vld [vmem:[%s1] sm:$0xff]
    %v17 = vld [vmem:[%s1 + $0x8] sm:$0xff]
    %v18 = vld [vmem:[%s1 + $0x10] sm:$0xff]
    %v19 = vld [vmem:[%s1 + $0x18] sm:$0xff]
    %v20 = vld [vmem:[%s1 + $0x20] sm:$0xff]
    %v21 = vld [vmem:[%s1 + $0x28] sm:$0xff]
    %v22 = vld [vmem:[%s1 + $0x30] sm:$0xff]
    %v23 = vld [vmem:[%s1 + $0x38] sm:$0xff]
    %v24 = vld [vmem:[%s1 + $0x40] sm:$0xff]
    %v25 = vld [vmem:[%s1 + $0x48] sm:$0xff]
    %v26 = vld [vmem:[%s1 + $0x50] sm:$0xff]
    %v27 = vld [vmem:[%s1 + $0x58] sm:$0xff]
    %v28 = vld [vmem:[%s1 + $0x60] sm:$0xff]
    %v29 = vld [vmem:[%s1 + $0x68] sm:$0xff]
    %v30 = vld [vmem:[%s1 + $0x70] sm:$0xff]
    %v31 = vld [vmem:[%s1 + $0x78] sm:$0xff]
    %v32 = vld [vmem:[%s1 + $0x80] sm:$0xff]
    %v33 = vld [vmem:[%s1 + $0x88] sm:$0xff]
    %v34 = vld [vmem:[%s1 + $0x90] sm:$0xff]
    %v35 = vld [vmem:[%s1 + $0x98] sm:$0xff]
    %v36 = vld [vmem:[%s1 + $0xa0] sm:$0xff]
    %v37 = vld [vmem:[%s1 + $0xa8] sm:$0xff]
    %v38 = vld [vmem:[%s1 + $0xb0] sm:$0xff]
    %v39 = vld [vmem:[%s1 + $0xb8] sm:$0xff]
    %v40 = vld [vmem:[%s1 + $0xc0] sm:$0xf]
    %vm41 = vcmask 556032
    %v43 = vsel %vm41, %v13, 0
    %v46 = vsel %vm41, %v15, 0
    %vm48 = vcmask 1043456
    %v50 = vsel %vm48, %v40, 0
    %52 = vmatprep.subr.mxu0 0.0
    %53 = vmatpush1.msra.mxu0 %v31
    %54 = vmatprep.subr.mxu0 0.0
    %55 = vmatpush1.msra.mxu0 %v30
    %56 = vmatprep.subr.mxu0 0.0
    %57 = vmatpush1.msra.mxu0 %v29
    %58 = vmatprep.subr.mxu0 0.0
    %59 = vmatpush1.msra.mxu0 %v28
    %60 = vmatprep.subr.mxu0 0.0
    %61 = vmatpush1.msra.mxu0 %v27
    %62 = vmatprep.subr.mxu0 0.0
    %63 = vmatpush1.msra.mxu0 %v26
    %64 = vmatprep.subr.mxu0 0.0
    %65 = vmatpush1.msra.mxu0 %v25
    %66 = vmatprep.subr.mxu0 0.0
    %67 = vmatpush1.msra.mxu0 %v24
    %68 = vmatprep.subr.mxu0 0.0
    %69 = vmatpush1.msra.mxu0 %v23
    %70 = vmatprep.subr.mxu0 0.0
    %71 = vmatpush1.msra.mxu0 %v22
    %72 = vmatprep.subr.mxu0 0.0
    %73 = vmatpush1.msra.mxu0 %v21
    %74 = vmatprep.subr.mxu0 0.0
    %75 = vmatpush1.msra.mxu0 %v20
    %76 = vmatprep.subr.mxu0 0.0
    %77 = vmatpush1.msra.mxu0 %v19
    %78 = vmatprep.subr.mxu0 0.0
    %79 = vmatpush1.msra.mxu0 %v18
    %80 = vmatprep.subr.mxu0 0.0
    %81 = vmatpush1.msra.mxu0 %v17
    %82 = vmatprep.subr.mxu0 0.0
    %83 = vmatpush1.msra.mxu0 %v16
    %84 = vmatprep.subr.mxu0 0.0
    %85 = vmatpush2.msra.mxu0 0.0
    %86 = vmatprep.subr.mxu0 0.0
    %87 = vmatpush2.msra.mxu0 0.0
    %88 = vmatprep.subr.mxu0 0.0
    %89 = vmatpush2.msra.mxu0 0.0
    %90 = vmatprep.subr.mxu0 0.0
    %91 = vmatpush2.msra.mxu0 0.0
    %92 = vmatprep.subr.mxu0 0.0
    %93 = vmatpush2.msra.mxu0 0.0
    %94 = vmatprep.subr.mxu0 0.0
    %95 = vmatpush2.msra.mxu0 0.0
    %96 = vmatprep.subr.mxu0 0.0
    %97 = vmatpush2.msra.mxu0 0.0
    %98 = vmatprep.subr.mxu0 0.0
    %99 = vmatpush2.msra.mxu0 %v50
    %100 = vmatprep.subr.mxu0 0.0
    %101 = vmatpush2.msra.mxu0 %v39
    %102 = vmatprep.subr.mxu0 0.0
    %103 = vmatpush2.msra.mxu0 %v38
    %104 = vmatprep.subr.mxu0 0.0
    %105 = vmatpush2.msra.mxu0 %v37
    %106 = vmatprep.subr.mxu0 0.0
    %107 = vmatpush2.msra.mxu0 %v36
    %108 = vmatprep.subr.mxu0 0.0
    %109 = vmatpush2.msra.mxu0 %v35
    %110 = vmatprep.subr.mxu0 0.0
    %111 = vmatpush2.msra.mxu0 %v34
    %112 = vmatprep.subr.mxu0 0.0
    %113 = vmatpush2.msra.mxu0 %v33
    %114 = vmatprep.subr.mxu0 0.0
    %115 = vmatpush2.msra.mxu0 %v32
    %116 = vmatprep.mubr.f32.mxu0 %v43
    %117 = vmatmul.mubr.f32.gmra.mxu0 %v12
    %v118 = vpop.f32.mrf.mxu0
    %v119 = vadd.f32 0.0, %v118
    %v120 = vpop.f32.mrf.mxu0
    %121 = vmatprep.mubr.f32.mxu0 %v46
    %122 = vmatmul.mubr.f32.gmra.mxu0 %v14
    %v123 = vpop.f32.mrf.mxu0
    %v124 = vadd.f32 0.0, %v123
    %v125 = vpop.f32.mrf.mxu0
    %126 = vdwg.mxu0
    %v127 = vpack.c.bf16 %v124, %v119
    %v129 = vunpack.c.l.b16 %v127
    %v130 = vunpack.c.h.b16 %v127
    %v131 = vpack.c.b16 %v129, %v129
    %v132 = vpack.c.b16 %v130, %v130
    %vm135 = vcmask 396288
    %136 = vst.msk [vmem:[#allocation2] sm:$0xf] %vm135, %v131
    %137 = vst.msk [vmem:[#allocation2 + $0x4] sm:$0xf] %vm135, %v132
    // Predicated region
    $region10: #{tpu_custom_call.1} parent=1 // pred_check
      _
    $region11: #{tpu_custom_call.1} parent=1 // pred_check_branch
      %139 = sbr.rel (0) target = $region13
    $region12: #{tpu_custom_call.1} parent=1 // pred_region
      %s141 = ssub.s32 128, 128
      %142 = vsyncadd [#allocation3], %s141
      %s143 = sshll.u32 [#allocation2], 4
      %s144 = int_to_ptr.vmem [resolvable:$true] %s143
      %149 = dma.vmem_to_hbm [thread:$0]  %s144, 128, %s2, [#allocation3], 64, 64, 4
    $region13: #{tpu_custom_call.1} parent=1 // pred_fallthru
      _
    // Predicated region
    $region14: #{tpu_custom_call.1} parent=1 // pred_check
      _
    $region15: #{tpu_custom_call.1} parent=1 // pred_check_branch
      %151 = sbr.rel (0) target = $region17
    $region16: #{tpu_custom_call.1} parent=1 // pred_region
      %152 = dma.done [#allocation3], 128
    $region17: #{tpu_custom_call.1} parent=1 // pred_fallthru
      _
    %153 = vsyncpa [#allocation3], 1

</llo_original>
